<compile_context>
chip_gen: v7x
topology: tpu7x:2x2x1
jax: 0.10.0
libtpu: 0.0.40
codegen_flags: <defaults>
</compile_context>

<pallas_src>
import jax
import jax.numpy as jnp
from jax.experimental import pallas as pl
from jax.experimental.pallas import tpu as pltpu

LN_EPS = 1e-5  # matches nn.LayerNorm default


def _round_up(x, m):
    return (x + m - 1) // m * m


def _gelu_exact(x):
    # PyTorch nn.GELU() default = exact erf formulation.
    return 0.5 * x * (1.0 + jax.lax.erf(x * (1.0 / jnp.sqrt(2.0).astype(x.dtype))))


def _layernorm(x, gamma, beta):
    mu = jnp.mean(x, axis=-1, keepdims=True)
    var = jnp.mean((x - mu) ** 2, axis=-1, keepdims=True)
    return (x - mu) * jax.lax.rsqrt(var + LN_EPS) * gamma + beta


def mlp_kernel(x_ref,
               w1_ref, b1_ref, g1_ref, be1_ref,
               w2_ref, b2_ref, g2_ref, be2_ref,
               w3_ref, b3_ref,
               out_ref,
               h_ref):
    j = pl.program_id(1)

    # Compute the hidden activation once per row-block (j == 0) and cache it
    # in VMEM scratch; reuse it for every vocab tile j.
    @pl.when(j == 0)
    def _():
        h = jnp.dot(x_ref[...], w1_ref[...],
                    preferred_element_type=jnp.float32) + b1_ref[...]
        h = _gelu_exact(_layernorm(h, g1_ref[...], be1_ref[...]))
        # Dropout is identity in eval mode.
        h = jnp.dot(h, w2_ref[...],
                    preferred_element_type=jnp.float32) + b2_ref[...]
        h = _gelu_exact(_layernorm(h, g2_ref[...], be2_ref[...]))
        h_ref[...] = h

    # Final Linear(d_ff//2 -> vocab), tiled over the vocab axis.
    logits = jnp.dot(h_ref[...], w3_ref[...],
                     preferred_element_type=jnp.float32) + b3_ref[...]
    out_ref[...] = logits.astype(out_ref.dtype)


def _vmem_estimate_bytes(tm, tn, d_in, d_ff, d_half):
    f32 = 4
    # double-buffered per-iteration input/output blocks + persistent scratch
    per_iter = (tm * d_in + d_in * d_ff + 3 * d_ff
                + d_ff * d_half + 3 * d_half
                + d_half * tn + tn + tm * tn)
    scratch = tm * d_half
    return (2 * per_iter + scratch) * f32


def init_params(key, vocab_size, d_embed, context_size, d_ff):
    d_in = context_size * d_embed
    d_half = d_ff // 2
    ks = jax.random.split(key, 8)
    scale = 0.02

    def lin(k, fan_in, fan_out):
        # stored as (in, out) == PyTorch weight (out, in) transposed
        return scale * jax.random.normal(k, (fan_in, fan_out), jnp.float32)

    return {
        "emb": scale * jax.random.normal(ks[0], (vocab_size, d_embed), jnp.float32),
        "w1": lin(ks[1], d_in, d_ff),
        "b1": scale * jax.random.normal(ks[2], (1, d_ff), jnp.float32),
        "g1": jnp.ones((1, d_ff), jnp.float32),
        "be1": jnp.zeros((1, d_ff), jnp.float32),
        "w2": lin(ks[3], d_ff, d_half),
        "b2": scale * jax.random.normal(ks[4], (1, d_half), jnp.float32),
        "g2": jnp.ones((1, d_half), jnp.float32),
        "be2": jnp.zeros((1, d_half), jnp.float32),
        "w3": lin(ks[5], d_half, vocab_size),
        "b3": scale * jax.random.normal(ks[6], (1, vocab_size), jnp.float32),
    }


def mlp_forward(tokens, params, *, tm=None, tn=None):
    """tokens: (B, T) int32 indices into the vocab -> (B, vocab) f32 logits."""
    emb = params["emb"]
    B, T = tokens.shape
    E = emb.shape[1]
    d_in = T * E
    d_ff = params["w1"].shape[1]
    d_half = params["w2"].shape[1]
    V = params["w3"].shape[1]

    # Embedding gather + flatten (glue, plain JAX).
    x = jnp.take(emb, tokens, axis=0).reshape(B, d_in)

    # ---- tile sizes: lane-dense (128-multiple) vocab tiles, >=8-row M tiles.
    if tm is None:
        tm = min(256, _round_up(B, 8))
    if tn is None:
        tn = min(512, _round_up(V, 128))

    Mp = _round_up(B, tm)
    Vp = _round_up(V, tn)

    x_p = jnp.pad(x, ((0, Mp - B), (0, 0))) if Mp != B else x
    w3 = params["w3"]
    b3 = params["b3"]
    if Vp != V:
        w3 = jnp.pad(w3, ((0, 0), (0, Vp - V)))
        b3 = jnp.pad(b3, ((0, 0), (0, Vp - V)))

    grid = (Mp // tm, Vp // tn)

    in_specs = [
        pl.BlockSpec((tm, d_in), lambda i, j: (i, 0)),      # x (row tile)
        pl.BlockSpec((d_in, d_ff), lambda i, j: (0, 0)),    # w1 (resident)
        pl.BlockSpec((1, d_ff), lambda i, j: (0, 0)),       # b1
        pl.BlockSpec((1, d_ff), lambda i, j: (0, 0)),       # g1
        pl.BlockSpec((1, d_ff), lambda i, j: (0, 0)),       # be1
        pl.BlockSpec((d_ff, d_half), lambda i, j: (0, 0)),  # w2 (resident)
        pl.BlockSpec((1, d_half), lambda i, j: (0, 0)),     # b2
        pl.BlockSpec((1, d_half), lambda i, j: (0, 0)),     # g2
        pl.BlockSpec((1, d_half), lambda i, j: (0, 0)),     # be2
        pl.BlockSpec((d_half, tn), lambda i, j: (0, j)),    # w3 (vocab tile)
        pl.BlockSpec((1, tn), lambda i, j: (0, j)),         # b3 (vocab tile)
    ]
    out_spec = pl.BlockSpec((tm, tn), lambda i, j: (i, j))

    est = _vmem_estimate_bytes(tm, tn, d_in, d_ff, d_half)
    vmem_limit = int(min(max(int(est * 1.25) + (4 << 20), 32 << 20), 64 << 20))

    out = pl.pallas_call(
        mlp_kernel,
        grid=grid,
        in_specs=in_specs,
        out_specs=out_spec,
        out_shape=jax.ShapeDtypeStruct((Mp, Vp), jnp.float32),
        scratch_shapes=[pltpu.VMEM((tm, d_half), jnp.float32)],
        compiler_params=pltpu.CompilerParams(
            dimension_semantics=("parallel", "arbitrary"),
            vmem_limit_bytes=vmem_limit,
        ),
    )(x_p,
      params["w1"], params["b1"], params["g1"], params["be1"],
      params["w2"], params["b2"], params["g2"], params["be2"],
      w3, b3)

    return out[:B, :V]


# Pure-JAX reference for a correctness check.
def mlp_reference(tokens, params):
    emb = params["emb"]
    B, T = tokens.shape
    x = jnp.take(emb, tokens, axis=0).reshape(B, -1)
    h = x @ params["w1"] + params["b1"]
    h = _gelu_exact(_layernorm(h, params["g1"], params["be1"]))
    h = h @ params["w2"] + params["b2"]
    h = _gelu_exact(_layernorm(h, params["g2"], params["be2"]))
    return h @ params["w3"] + params["b3"]


if __name__ == "__main__":
    # Small config consistent with the module's constructor.
    # NOTE: at this toy size the kernel is launch-overhead-bound; the tiling
    # only pays off at realistic LM-head sizes (vocab 32K+, d_ff 4K+).
    vocab_size = 32
    d_embed = 16
    context_size = 8
    d_ff = 64
    batch = 2

    key = jax.random.PRNGKey(0)
    k_params, k_tokens = jax.random.split(key)
    params = init_params(k_params, vocab_size, d_embed, context_size, d_ff)
    tokens = jax.random.randint(k_tokens, (batch, context_size), 0, vocab_size,
                                dtype=jnp.int32)

    logits = mlp_forward(tokens, params)
    jax.block_until_ready(logits)

    ref = mlp_reference(tokens, params)
    assert logits.shape == (batch, vocab_size)
    assert jnp.allclose(logits, ref, atol=1e-4, rtol=1e-4)

    print("KERNEL_OK")
</pallas_src>

<mosaic_0001>
module attributes {stable_mosaic.version = 11 : i64} {
  func.func @mlp_kernel(%arg0: i32, %arg1: i32, %arg2: memref<8x128xf32, #tpu.memory_space<vmem>>, %arg3: memref<128x64xf32, #tpu.memory_space<vmem>>, %arg4: memref<1x64xf32, #tpu.memory_space<vmem>>, %arg5: memref<1x64xf32, #tpu.memory_space<vmem>>, %arg6: memref<1x64xf32, #tpu.memory_space<vmem>>, %arg7: memref<64x32xf32, #tpu.memory_space<vmem>>, %arg8: memref<1x32xf32, #tpu.memory_space<vmem>>, %arg9: memref<1x32xf32, #tpu.memory_space<vmem>>, %arg10: memref<1x32xf32, #tpu.memory_space<vmem>>, %arg11: memref<32x128xf32, #tpu.memory_space<vmem>>, %arg12: memref<1x128xf32, #tpu.memory_space<vmem>>, %arg13: memref<8x128xf32, #tpu.memory_space<vmem>>, %arg14: memref<8x32xf32, #tpu.memory_space<vmem>>) attributes {dimension_semantics = [#tpu.dimension_semantics<parallel>, #tpu.dimension_semantics<arbitrary>], iteration_bounds = array<i64: 1, 1>, scalar_prefetch = 0 : i64, scratch_operands = 1 : i64, tpu.core_type = #tpu.core_type<tc>, window_params = [{transform_indices = @transform_0, window_bounds = array<i64: 8, 128>}, {pipeline_mode = #tpu.pipeline_mode<synchronous>, transform_indices = @transform_1, window_bounds = array<i64: 128, 64>}, {pipeline_mode = #tpu.pipeline_mode<synchronous>, transform_indices = @transform_2, window_bounds = array<i64: 1, 64>}, {pipeline_mode = #tpu.pipeline_mode<synchronous>, transform_indices = @transform_3, window_bounds = array<i64: 1, 64>}, {pipeline_mode = #tpu.pipeline_mode<synchronous>, transform_indices = @transform_4, window_bounds = array<i64: 1, 64>}, {pipeline_mode = #tpu.pipeline_mode<synchronous>, transform_indices = @transform_5, window_bounds = array<i64: 64, 32>}, {pipeline_mode = #tpu.pipeline_mode<synchronous>, transform_indices = @transform_6, window_bounds = array<i64: 1, 32>}, {pipeline_mode = #tpu.pipeline_mode<synchronous>, transform_indices = @transform_7, window_bounds = array<i64: 1, 32>}, {pipeline_mode = #tpu.pipeline_mode<synchronous>, transform_indices = @transform_8, window_bounds = array<i64: 1, 32>}, {transform_indices = @transform_9, window_bounds = array<i64: 32, 128>}, {transform_indices = @transform_10, window_bounds = array<i64: 1, 128>}, {transform_indices = @transform_11, window_bounds = array<i64: 8, 128>}]} {
    %c0_i32 = arith.constant 0 : i32
    %0 = arith.cmpi eq, %arg1, %c0_i32 : i32
    %1 = arith.extui %0 : i1 to i32
    %c0_i32_0 = arith.constant 0 : i32
    %2 = arith.cmpi ne, %1, %c0_i32_0 : i32
    scf.if %2 {
      %c0_8 = arith.constant 0 : index
      %c0_9 = arith.constant 0 : index
      %10 = vector.load %arg2[%c0_8, %c0_9] : memref<8x128xf32, #tpu.memory_space<vmem>>, vector<8x128xf32>
      %c0_10 = arith.constant 0 : index
      %c0_11 = arith.constant 0 : index
      %11 = vector.load %arg3[%c0_10, %c0_11] : memref<128x64xf32, #tpu.memory_space<vmem>>, vector<128x64xf32>
      %cst_12 = arith.constant dense<0.000000e+00> : vector<8x64xf32>
      %12 = tpu.matmul %10, %11, %cst_12 {dimension_numbers = #tpu.dot_dimension_numbers<[1], [0], [0], [1], [0, 0, 1, 1], [], []>} : vector<8x128xf32>, vector<128x64xf32>, vector<8x64xf32> -> vector<8x64xf32>
      %c0_13 = arith.constant 0 : index
      %c0_14 = arith.constant 0 : index
      %13 = vector.load %arg4[%c0_13, %c0_14] : memref<1x64xf32, #tpu.memory_space<vmem>>, vector<1x64xf32>
      %14 = vector.broadcast %13 : vector<1x64xf32> to vector<8x64xf32>
      %15 = arith.addf %12, %14 : vector<8x64xf32>
      %c0_15 = arith.constant 0 : index
      %c0_16 = arith.constant 0 : index
      %16 = vector.load %arg5[%c0_15, %c0_16] : memref<1x64xf32, #tpu.memory_space<vmem>>, vector<1x64xf32>
      %c0_17 = arith.constant 0 : index
      %c0_18 = arith.constant 0 : index
      %17 = vector.load %arg6[%c0_17, %c0_18] : memref<1x64xf32, #tpu.memory_space<vmem>>, vector<1x64xf32>
      %cst_19 = arith.constant dense<0.000000e+00> : vector<8xf32>
      %18 = vector.multi_reduction <add>, %15, %cst_19 [1] : vector<8x64xf32> to vector<8xf32>
      %19 = vector.shape_cast %18 : vector<8xf32> to vector<8x1xf32>
      %cst_20 = arith.constant 6.400000e+01 : f32
      %20 = vector.broadcast %cst_20 : f32 to vector<8x1xf32>
      %21 = arith.divf %19, %20 : vector<8x1xf32>
      %22 = vector.broadcast %21 : vector<8x1xf32> to vector<8x64xf32>
      %23 = arith.subf %15, %22 : vector<8x64xf32>
      %24 = arith.mulf %23, %23 : vector<8x64xf32>
      %cst_21 = arith.constant dense<0.000000e+00> : vector<8xf32>
      %25 = vector.multi_reduction <add>, %24, %cst_21 [1] : vector<8x64xf32> to vector<8xf32>
      %26 = vector.shape_cast %25 : vector<8xf32> to vector<8x1xf32>
      %cst_22 = arith.constant 6.400000e+01 : f32
      %27 = vector.broadcast %cst_22 : f32 to vector<8x1xf32>
      %28 = arith.divf %26, %27 : vector<8x1xf32>
      %29 = vector.broadcast %21 : vector<8x1xf32> to vector<8x64xf32>
      %30 = arith.subf %15, %29 : vector<8x64xf32>
      %cst_23 = arith.constant 9.99999974E-6 : f32
      %31 = vector.broadcast %cst_23 : f32 to vector<8x1xf32>
      %32 = arith.addf %28, %31 : vector<8x1xf32>
      %33 = math.rsqrt %32 : vector<8x1xf32>
      %34 = vector.broadcast %33 : vector<8x1xf32> to vector<8x64xf32>
      %35 = arith.mulf %30, %34 : vector<8x64xf32>
      %36 = vector.broadcast %16 : vector<1x64xf32> to vector<8x64xf32>
      %37 = arith.mulf %35, %36 : vector<8x64xf32>
      %38 = vector.broadcast %17 : vector<1x64xf32> to vector<8x64xf32>
      %39 = arith.addf %37, %38 : vector<8x64xf32>
      %cst_24 = arith.constant 5.000000e-01 : f32
      %40 = vector.broadcast %cst_24 : f32 to vector<8x64xf32>
      %41 = arith.mulf %40, %39 : vector<8x64xf32>
      %cst_25 = arith.constant 2.000000e+00 : f32
      %42 = math.sqrt %cst_25 : f32
      %cst_26 = arith.constant 1.000000e+00 : f32
      %43 = arith.divf %cst_26, %42 : f32
      %44 = vector.broadcast %43 : f32 to vector<8x64xf32>
      %45 = arith.mulf %39, %44 : vector<8x64xf32>
      %46 = math.erf %45 : vector<8x64xf32>
      %cst_27 = arith.constant 1.000000e+00 : f32
      %47 = vector.broadcast %cst_27 : f32 to vector<8x64xf32>
      %48 = arith.addf %47, %46 : vector<8x64xf32>
      %49 = arith.mulf %41, %48 : vector<8x64xf32>
      %c0_28 = arith.constant 0 : index
      %c0_29 = arith.constant 0 : index
      %50 = vector.load %arg7[%c0_28, %c0_29] : memref<64x32xf32, #tpu.memory_space<vmem>>, vector<64x32xf32>
      %cst_30 = arith.constant dense<0.000000e+00> : vector<8x32xf32>
      %51 = tpu.matmul %49, %50, %cst_30 {dimension_numbers = #tpu.dot_dimension_numbers<[1], [0], [0], [1], [0, 0, 1, 1], [], []>} : vector<8x64xf32>, vector<64x32xf32>, vector<8x32xf32> -> vector<8x32xf32>
      %c0_31 = arith.constant 0 : index
      %c0_32 = arith.constant 0 : index
      %52 = vector.load %arg8[%c0_31, %c0_32] : memref<1x32xf32, #tpu.memory_space<vmem>>, vector<1x32xf32>
      %53 = vector.broadcast %52 : vector<1x32xf32> to vector<8x32xf32>
      %54 = arith.addf %51, %53 : vector<8x32xf32>
      %c0_33 = arith.constant 0 : index
      %c0_34 = arith.constant 0 : index
      %55 = vector.load %arg9[%c0_33, %c0_34] : memref<1x32xf32, #tpu.memory_space<vmem>>, vector<1x32xf32>
      %c0_35 = arith.constant 0 : index
      %c0_36 = arith.constant 0 : index
      %56 = vector.load %arg10[%c0_35, %c0_36] : memref<1x32xf32, #tpu.memory_space<vmem>>, vector<1x32xf32>
      %cst_37 = arith.constant dense<0.000000e+00> : vector<8xf32>
      %57 = vector.multi_reduction <add>, %54, %cst_37 [1] : vector<8x32xf32> to vector<8xf32>
      %58 = vector.shape_cast %57 : vector<8xf32> to vector<8x1xf32>
      %cst_38 = arith.constant 3.200000e+01 : f32
      %59 = vector.broadcast %cst_38 : f32 to vector<8x1xf32>
      %60 = arith.divf %58, %59 : vector<8x1xf32>
      %61 = vector.broadcast %60 : vector<8x1xf32> to vector<8x32xf32>
      %62 = arith.subf %54, %61 : vector<8x32xf32>
      %63 = arith.mulf %62, %62 : vector<8x32xf32>
      %cst_39 = arith.constant dense<0.000000e+00> : vector<8xf32>
      %64 = vector.multi_reduction <add>, %63, %cst_39 [1] : vector<8x32xf32> to vector<8xf32>
      %65 = vector.shape_cast %64 : vector<8xf32> to vector<8x1xf32>
      %cst_40 = arith.constant 3.200000e+01 : f32
      %66 = vector.broadcast %cst_40 : f32 to vector<8x1xf32>
      %67 = arith.divf %65, %66 : vector<8x1xf32>
      %68 = vector.broadcast %60 : vector<8x1xf32> to vector<8x32xf32>
      %69 = arith.subf %54, %68 : vector<8x32xf32>
      %cst_41 = arith.constant 9.99999974E-6 : f32
      %70 = vector.broadcast %cst_41 : f32 to vector<8x1xf32>
      %71 = arith.addf %67, %70 : vector<8x1xf32>
      %72 = math.rsqrt %71 : vector<8x1xf32>
      %73 = vector.broadcast %72 : vector<8x1xf32> to vector<8x32xf32>
      %74 = arith.mulf %69, %73 : vector<8x32xf32>
      %75 = vector.broadcast %55 : vector<1x32xf32> to vector<8x32xf32>
      %76 = arith.mulf %74, %75 : vector<8x32xf32>
      %77 = vector.broadcast %56 : vector<1x32xf32> to vector<8x32xf32>
      %78 = arith.addf %76, %77 : vector<8x32xf32>
      %cst_42 = arith.constant 5.000000e-01 : f32
      %79 = vector.broadcast %cst_42 : f32 to vector<8x32xf32>
      %80 = arith.mulf %79, %78 : vector<8x32xf32>
      %cst_43 = arith.constant 2.000000e+00 : f32
      %81 = math.sqrt %cst_43 : f32
      %cst_44 = arith.constant 1.000000e+00 : f32
      %82 = arith.divf %cst_44, %81 : f32
      %83 = vector.broadcast %82 : f32 to vector<8x32xf32>
      %84 = arith.mulf %78, %83 : vector<8x32xf32>
      %85 = math.erf %84 : vector<8x32xf32>
      %cst_45 = arith.constant 1.000000e+00 : f32
      %86 = vector.broadcast %cst_45 : f32 to vector<8x32xf32>
      %87 = arith.addf %86, %85 : vector<8x32xf32>
      %88 = arith.mulf %80, %87 : vector<8x32xf32>
      %c0_46 = arith.constant 0 : index
      %c0_47 = arith.constant 0 : index
      %89 = vector.load %arg14[%c0_46, %c0_47] : memref<8x32xf32, #tpu.memory_space<vmem>>, vector<8x32xf32>
      tpu.vector_store %arg14[%c0_46, %c0_47], %88 {strides = array<i32>} : memref<8x32xf32, #tpu.memory_space<vmem>>, vector<8x32xf32>,
    } else {
    }
    %c0 = arith.constant 0 : index
    %c0_1 = arith.constant 0 : index
    %3 = vector.load %arg14[%c0, %c0_1] : memref<8x32xf32, #tpu.memory_space<vmem>>, vector<8x32xf32>
    %c0_2 = arith.constant 0 : index
    %c0_3 = arith.constant 0 : index
    %4 = vector.load %arg11[%c0_2, %c0_3] : memref<32x128xf32, #tpu.memory_space<vmem>>, vector<32x128xf32>
    %cst = arith.constant dense<0.000000e+00> : vector<8x128xf32>
    %5 = tpu.matmul %3, %4, %cst {dimension_numbers = #tpu.dot_dimension_numbers<[1], [0], [0], [1], [0, 0, 1, 1], [], []>} : vector<8x32xf32>, vector<32x128xf32>, vector<8x128xf32> -> vector<8x128xf32>
    %c0_4 = arith.constant 0 : index
    %c0_5 = arith.constant 0 : index
    %6 = vector.load %arg12[%c0_4, %c0_5] : memref<1x128xf32, #tpu.memory_space<vmem>>, vector<1x128xf32>
    %7 = vector.broadcast %6 : vector<1x128xf32> to vector<8x128xf32>
    %8 = arith.addf %5, %7 : vector<8x128xf32>
    %c0_6 = arith.constant 0 : index
    %c0_7 = arith.constant 0 : index
    %9 = vector.load %arg13[%c0_6, %c0_7] : memref<8x128xf32, #tpu.memory_space<vmem>>, vector<8x128xf32>
    tpu.vector_store %arg13[%c0_6, %c0_7], %8 {strides = array<i32>} : memref<8x128xf32, #tpu.memory_space<vmem>>, vector<8x128xf32>,
    return
  }
  func.func @transform_0(%arg0: i32, %arg1: i32) -> (i32, i32) {
    %c0_i32 = arith.constant 0 : i32
    %c0_i32_0 = arith.constant 0 : i32
    return %arg0, %c0_i32 : i32, i32
  }
  func.func @transform_1(%arg0: i32, %arg1: i32) -> (i32, i32) {
    %c0_i32 = arith.constant 0 : i32
    %c0_i32_0 = arith.constant 0 : i32
    %c0_i32_1 = arith.constant 0 : i32
    return %c0_i32, %c0_i32_0 : i32, i32
  }
  func.func @transform_2(%arg0: i32, %arg1: i32) -> (i32, i32) {
    %c0_i32 = arith.constant 0 : i32
    %c0_i32_0 = arith.constant 0 : i32
    %c0_i32_1 = arith.constant 0 : i32
    return %c0_i32, %c0_i32_0 : i32, i32
  }
  func.func @transform_3(%arg0: i32, %arg1: i32) -> (i32, i32) {
    %c0_i32 = arith.constant 0 : i32
    %c0_i32_0 = arith.constant 0 : i32
    %c0_i32_1 = arith.constant 0 : i32
    return %c0_i32, %c0_i32_0 : i32, i32
  }
  func.func @transform_4(%arg0: i32, %arg1: i32) -> (i32, i32) {
    %c0_i32 = arith.constant 0 : i32
    %c0_i32_0 = arith.constant 0 : i32
    %c0_i32_1 = arith.constant 0 : i32
    return %c0_i32, %c0_i32_0 : i32, i32
  }
  func.func @transform_5(%arg0: i32, %arg1: i32) -> (i32, i32) {
    %c0_i32 = arith.constant 0 : i32
    %c0_i32_0 = arith.constant 0 : i32
    %c0_i32_1 = arith.constant 0 : i32
    return %c0_i32, %c0_i32_0 : i32, i32
  }
  func.func @transform_6(%arg0: i32, %arg1: i32) -> (i32, i32) {
    %c0_i32 = arith.constant 0 : i32
    %c0_i32_0 = arith.constant 0 : i32
    %c0_i32_1 = arith.constant 0 : i32
    return %c0_i32, %c0_i32_0 : i32, i32
  }
  func.func @transform_7(%arg0: i32, %arg1: i32) -> (i32, i32) {
    %c0_i32 = arith.constant 0 : i32
    %c0_i32_0 = arith.constant 0 : i32
    %c0_i32_1 = arith.constant 0 : i32
    return %c0_i32, %c0_i32_0 : i32, i32
  }
  func.func @transform_8(%arg0: i32, %arg1: i32) -> (i32, i32) {
    %c0_i32 = arith.constant 0 : i32
    %c0_i32_0 = arith.constant 0 : i32
    %c0_i32_1 = arith.constant 0 : i32
    return %c0_i32, %c0_i32_0 : i32, i32
  }
  func.func @transform_9(%arg0: i32, %arg1: i32) -> (i32, i32) {
    %c0_i32 = arith.constant 0 : i32
    %c0_i32_0 = arith.constant 0 : i32
    return %c0_i32, %arg1 : i32, i32
  }
  func.func @transform_10(%arg0: i32, %arg1: i32) -> (i32, i32) {
    %c0_i32 = arith.constant 0 : i32
    %c0_i32_0 = arith.constant 0 : i32
    return %c0_i32, %arg1 : i32, i32
  }
  func.func @transform_11(%arg0: i32, %arg1: i32) -> (i32, i32) {
    %c0_i32 = arith.constant 0 : i32
    return %arg0, %arg1 : i32, i32
  }
}

</mosaic_0001>

<llo_original>
// kernel: tpu_custom_call.1
$region0: #{tpu_custom_call.1}
  #allocation0 [shape = 'u32[]', space=smem, size = 0x4, offset = 0x4, fixed_abs, tag = 'smem constant byte address 0x4 - core index']
  #allocation1 [shape = 'u32[144,128]{1,0:T(1,128)}', space=vmem, size = 0x12000, scoped, tag = 'internal scratch']
  #allocation2 [shape = 'f32[8,32]{1,0:T(8,128)}', space=vmem, size = 0x1000, scoped, tag = 'scratch operand']
  %s0 = inlined_call_operand.vmem [shape: f32[8,128], index: 0, kind: input, shape index: {}]
  %s1 = inlined_call_operand.vmem [shape: f32[128,64], index: 1, kind: input, shape index: {}]
  %s2 = inlined_call_operand.vmem [shape: f32[1,64], index: 2, kind: input, shape index: {}]
  %s3 = inlined_call_operand.vmem [shape: f32[1,64], index: 3, kind: input, shape index: {}]
  %s4 = inlined_call_operand.vmem [shape: f32[1,64], index: 4, kind: input, shape index: {}]
  %s5 = inlined_call_operand.vmem [shape: f32[64,32], index: 5, kind: input, shape index: {}]
  %s6 = inlined_call_operand.vmem [shape: f32[1,32], index: 6, kind: input, shape index: {}]
  %s7 = inlined_call_operand.vmem [shape: f32[1,32], index: 7, kind: input, shape index: {}]
  %s8 = inlined_call_operand.vmem [shape: f32[1,32], index: 8, kind: input, shape index: {}]
  %s9 = inlined_call_operand.vmem [shape: f32[32,128], index: 9, kind: input, shape index: {}]
  %s10 = inlined_call_operand.vmem [shape: f32[1,128], index: 10, kind: input, shape index: {}]
  %s11 = inlined_call_operand.hbm [shape: f32[8,128], index: 11, kind: output, shape index: {}]
  %s12 = sld [smem:[#allocation0]]
  $region58: #{tpu_custom_call.1} parent=0
    _
  %s14 = ssub.s32 1, %s12
  %s15 = scalar_select 0, %s14, %s12
  $region1: #{tpu_custom_call.1} parent=0
    #allocation3 [shape = 'u8[4096]{0}', space=vmem, size = 0x1000, scoped, tag = 'output window, operand 0, single buffered']
    #allocation4 [shape = 's32[1]{0}', space=sflag, size = 0x4, scoped, tag = 'scoped memory for tpu_custom_call.1']
    %16 = vsyncpa [#allocation4], 0
    // Predicated region
    $region2: #{tpu_custom_call.1} parent=1 // pred_check
      _
    $region3: #{tpu_custom_call.1} parent=1 // pred_check_branch
      %18 = sbr.rel (0) target = $region5
    $region4: #{tpu_custom_call.1} parent=1 // pred_region
      _
    $region5: #{tpu_custom_call.1} parent=1 // pred_fallthru
      _
    // Predicated region
    $region6: #{tpu_custom_call.1} parent=1 // pred_check
      _
    $region7: #{tpu_custom_call.1} parent=1 // pred_check_branch
      %20 = sbr.rel (0) target = $region9
    $region8: #{tpu_custom_call.1} parent=1 // pred_region
      _
    $region9: #{tpu_custom_call.1} parent=1 // pred_fallthru
      _
    // Predicated region
    $region10: #{tpu_custom_call.1} parent=1 // pred_check
      _
    $region11: #{tpu_custom_call.1} parent=1 // pred_check_branch
      %22 = sbr.rel (0) target = $region13
    $region12: #{tpu_custom_call.1} parent=1 // pred_region
      _
    $region13: #{tpu_custom_call.1} parent=1 // pred_fallthru
      _
    // Predicated region
    $region14: #{tpu_custom_call.1} parent=1 // pred_check
      _
    $region15: #{tpu_custom_call.1} parent=1 // pred_check_branch
      %24 = sbr.rel (0) target = $region17
    $region16: #{tpu_custom_call.1} parent=1 // pred_region
      _
    $region17: #{tpu_custom_call.1} parent=1 // pred_fallthru
      _
    // Predicated region
    $region18: #{tpu_custom_call.1} parent=1 // pred_check
      _
    $region19: #{tpu_custom_call.1} parent=1 // pred_check_branch
      %26 = sbr.rel (0) target = $region21
    $region20: #{tpu_custom_call.1} parent=1 // pred_region
      _
    $region21: #{tpu_custom_call.1} parent=1 // pred_fallthru
      _
    // Predicated region
    $region22: #{tpu_custom_call.1} parent=1 // pred_check
      _
    $region23: #{tpu_custom_call.1} parent=1 // pred_check_branch
      %28 = sbr.rel (0) target = $region25
    $region24: #{tpu_custom_call.1} parent=1 // pred_region
      _
    $region25: #{tpu_custom_call.1} parent=1 // pred_fallthru
      _
    // Predicated region
    $region26: #{tpu_custom_call.1} parent=1 // pred_check
      _
    $region27: #{tpu_custom_call.1} parent=1 // pred_check_branch
      %30 = sbr.rel (0) target = $region29
    $region28: #{tpu_custom_call.1} parent=1 // pred_region
      _
    $region29: #{tpu_custom_call.1} parent=1 // pred_fallthru
      _
    // Predicated region
    $region30: #{tpu_custom_call.1} parent=1 // pred_check
      _
    $region31: #{tpu_custom_call.1} parent=1 // pred_check_branch
      %32 = sbr.rel (0) target = $region33
    $region32: #{tpu_custom_call.1} parent=1 // pred_region
      _
    $region33: #{tpu_custom_call.1} parent=1 // pred_fallthru
      _
    // Predicated region
    $region34: #{tpu_custom_call.1} parent=1 // pred_check
      _
    $region35: #{tpu_custom_call.1} parent=1 // pred_check_branch
      %34 = sbr.rel (0) target = $region37
    $region36: #{tpu_custom_call.1} parent=1 // pred_region
      _
    $region37: #{tpu_custom_call.1} parent=1 // pred_fallthru
      _
    // Predicated region
    $region38: #{tpu_custom_call.1} parent=1 // pred_check
      _
    $region39: #{tpu_custom_call.1} parent=1 // pred_check_branch
      %36 = sbr.rel (0) target = $region41
    $region40: #{tpu_custom_call.1} parent=1 // pred_region
      _
    $region41: #{tpu_custom_call.1} parent=1 // pred_fallthru
      _
    // Predicated region
    $region42: #{tpu_custom_call.1} parent=1 // pred_check
      _
    $region43: #{tpu_custom_call.1} parent=1 // pred_check_branch
      %38 = sbr.rel (0) target = $region45
    $region44: #{tpu_custom_call.1} parent=1 // pred_region
      _
    $region45: #{tpu_custom_call.1} parent=1 // pred_fallthru
      _
    %p39 = scmp.eq.s32.totalorder 0, 0
    // Predicated region
    $region46: #{tpu_custom_call.1} parent=1 // pred_check
      %p40 = pneg %p39
    $region47: #{tpu_custom_call.1} parent=1 // pred_check_branch
      %42 = sbr.rel (%p40) target = $region49
    $region48: #{tpu_custom_call.1} parent=1 // pred_region
      %v43 = vld [vmem:[%s0] sm:$0xff]
      %v44 = vld [vmem:[%s1] sm:$0xff]
      %v45 = vld [vmem:[%s1 + $0x8] sm:$0xff]
      %v46 = vld [vmem:[%s1 + $0x10] sm:$0xff]
      %v47 = vld [vmem:[%s1 + $0x18] sm:$0xff]
      %v48 = vld [vmem:[%s1 + $0x20] sm:$0xff]
      %v49 = vld [vmem:[%s1 + $0x28] sm:$0xff]
      %v50 = vld [vmem:[%s1 + $0x30] sm:$0xff]
      %v51 = vld [vmem:[%s1 + $0x38] sm:$0xff]
      %v52 = vld [vmem:[%s1 + $0x40] sm:$0xff]
      %v53 = vld [vmem:[%s1 + $0x48] sm:$0xff]
      %v54 = vld [vmem:[%s1 + $0x50] sm:$0xff]
      %v55 = vld [vmem:[%s1 + $0x58] sm:$0xff]
      %v56 = vld [vmem:[%s1 + $0x60] sm:$0xff]
      %v57 = vld [vmem:[%s1 + $0x68] sm:$0xff]
      %v58 = vld [vmem:[%s1 + $0x70] sm:$0xff]
      %v59 = vld [vmem:[%s1 + $0x78] sm:$0xff]
      %v60 = vld [vmem:[%s2] sm:$0x1]
      %v62 = vlaneseq
      %v63 = vshrl.u32 %v62, 7
      %v64 = vsub.s32 0, %v63
      %v65 = vrot.slane %v60, %v64
      %67 = vmatprep.subr.mxu0 0.0
      %68 = vmatpush1.msra.mxu0 %v44
      %69 = vmatprep.subr.mxu0 0.0
      %70 = vmatpush1.msra.mxu0 %v45
      %71 = vmatprep.subr.mxu0 0.0
      %72 = vmatpush1.msra.mxu0 %v46
      %73 = vmatprep.subr.mxu0 0.0
      %74 = vmatpush1.msra.mxu0 %v47
      %75 = vmatprep.subr.mxu0 0.0
      %76 = vmatpush1.msra.mxu0 %v48
      %77 = vmatprep.subr.mxu0 0.0
      %78 = vmatpush1.msra.mxu0 %v49
      %79 = vmatprep.subr.mxu0 0.0
      %80 = vmatpush1.msra.mxu0 %v50
      %81 = vmatprep.subr.mxu0 0.0
      %82 = vmatpush1.msra.mxu0 %v51
      %83 = vmatprep.subr.mxu0 0.0
      %84 = vmatpush1.msra.mxu0 %v52
      %85 = vmatprep.subr.mxu0 0.0
      %86 = vmatpush1.msra.mxu0 %v53
      %87 = vmatprep.subr.mxu0 0.0
      %88 = vmatpush1.msra.mxu0 %v54
      %89 = vmatprep.subr.mxu0 0.0
      %90 = vmatpush1.msra.mxu0 %v55
      %91 = vmatprep.subr.mxu0 0.0
      %92 = vmatpush1.msra.mxu0 %v56
      %93 = vmatprep.subr.mxu0 0.0
      %94 = vmatpush1.msra.mxu0 %v57
      %95 = vmatprep.subr.mxu0 0.0
      %96 = vmatpush1.msra.mxu0 %v58
      %97 = vmatprep.subr.mxu0 0.0
      %98 = vmatpush1.msra.mxu0 %v59
      %99 = vmatprep.subr.mxu0 0.0
      %100 = vmatpush1.msra.mxu0 0.0
      %101 = vmatprep.subr.mxu0 0.0
      %102 = vmatpush1.msra.mxu0 0.0
      %103 = vmatprep.subr.mxu0 0.0
      %104 = vmatpush1.msra.mxu0 0.0
      %105 = vmatprep.subr.mxu0 0.0
      %106 = vmatpush1.msra.mxu0 0.0
      %107 = vmatprep.subr.mxu0 0.0
      %108 = vmatpush1.msra.mxu0 0.0
      %109 = vmatprep.subr.mxu0 0.0
      %110 = vmatpush1.msra.mxu0 0.0
      %111 = vmatprep.subr.mxu0 0.0
      %112 = vmatpush1.msra.mxu0 0.0
      %113 = vmatprep.subr.mxu0 0.0
      %114 = vmatpush1.msra.mxu0 0.0
      %115 = vmatprep.subr.mxu0 0.0
      %116 = vmatpush1.msra.mxu0 0.0
      %117 = vmatprep.subr.mxu0 0.0
      %118 = vmatpush1.msra.mxu0 0.0
      %119 = vmatprep.subr.mxu0 0.0
      %120 = vmatpush1.msra.mxu0 0.0
      %121 = vmatprep.subr.mxu0 0.0
      %122 = vmatpush1.msra.mxu0 0.0
      %123 = vmatprep.subr.mxu0 0.0
      %124 = vmatpush1.msra.mxu0 0.0
      %125 = vmatprep.subr.mxu0 0.0
      %126 = vmatpush1.msra.mxu0 0.0
      %127 = vmatprep.subr.mxu0 0.0
      %128 = vmatpush1.msra.mxu0 0.0
      %129 = vmatprep.subr.mxu0 0.0
      %130 = vmatpush1.msra.mxu0 0.0
      %131 = vmatprep.mubr.f32.mxu0 0.0
      %132 = vmatmul.mubr.f32.gmra.mrb[0].mxu0 %v43
      %v133 = vpop.f32.mrb[0].mxu0
      %v134 = vadd.f32 %v65, %v133
      %v135 = vpop.f32.mrb[0].mxu0
      %136 = vdwg.mxu0
      %v137 = vld [vmem:[%s3] sm:$0x1]
      %v138 = vld [vmem:[%s4] sm:$0x1]
      %vm139 = vcmask 523264
      %v140 = vsel %vm139, %v134, 0.0
      %141 = vadd.xlane.f32.xlu0 %v140
      %v142 = vpop.xlane.xlu0 %141
      %v143 = vrcp.pop 64.0
      %v144 = vmul.f32 %v142, %v143
      %v145 = vsub.f32 %v134, %v144
      %v146 = vmul.f32 %v145, %v145
      %v147 = vsel %vm139, %v146, 0.0
      %148 = vadd.xlane.f32.xlu0 %v147
      %v149 = vpop.xlane.xlu0 %148
      %v150 = vmul.f32 %v149, %v143
      %v151 = vadd.f32 %v150, 1e-05
      %v152 = vrsqrt.pop %v151
      %v153 = vmul.f32 %v145, %v152
      %v155 = vlaneseq
      %v156 = vshrl.u32 %v155, 7
      %v157 = vsub.s32 0, %v156
      %v158 = vrot.slane %v137, %v157
      %v160 = vmul.f32 %v153, %v158
      %v162 = vlaneseq
      %v163 = vshrl.u32 %v162, 7
      %v164 = vsub.s32 0, %v163
      %v165 = vrot.slane %v138, %v164
      %v167 = vadd.f32 %v160, %v165
      %v168 = vmul.f32 %v167, 0.5
      %v169 = vmul.f32 %v167, 0.70710677
      %v170 = verf.f32.pop %v169
      %v171 = vadd.f32 %v170, 1.0
      %v172 = vmul.f32 %v168, %v171
      %v173 = vld [vmem:[%s5] sm:$0xff]
      %v174 = vld [vmem:[%s5 + $0x8] sm:$0xff]
      %v175 = vld [vmem:[%s5 + $0x10] sm:$0xff]
      %v176 = vld [vmem:[%s5 + $0x18] sm:$0xff]
      %v177 = vld [vmem:[%s5 + $0x20] sm:$0xff]
      %v178 = vld [vmem:[%s5 + $0x28] sm:$0xff]
      %v179 = vld [vmem:[%s5 + $0x30] sm:$0xff]
      %v180 = vld [vmem:[%s5 + $0x38] sm:$0xff]
      %v181 = vld [vmem:[%s6] sm:$0x1]
      %v183 = vlaneseq
      %v184 = vshrl.u32 %v183, 7
      %v185 = vsub.s32 0, %v184
      %v186 = vrot.slane %v181, %v185
      %v189 = vsel %vm139, %v172, 0
      %191 = vmatprep.subr.mxu0 0.0
      %192 = vmatpush1.msra.mxu0 %v173
      %193 = vmatprep.subr.mxu0 0.0
      %194 = vmatpush1.msra.mxu0 %v174
      %195 = vmatprep.subr.mxu0 0.0
      %196 = vmatpush1.msra.mxu0 %v175
      %197 = vmatprep.subr.mxu0 0.0
      %198 = vmatpush1.msra.mxu0 %v176
      %199 = vmatprep.subr.mxu0 0.0
      %200 = vmatpush1.msra.mxu0 %v177
      %201 = vmatprep.subr.mxu0 0.0
      %202 = vmatpush1.msra.mxu0 %v178
      %203 = vmatprep.subr.mxu0 0.0
      %204 = vmatpush1.msra.mxu0 %v179
      %205 = vmatprep.subr.mxu0 0.0
      %206 = vmatpush1.msra.mxu0 %v180
      %207 = vmatprep.subr.mxu0 0.0
      %208 = vmatpush1.msra.mxu0 0.0
      %209 = vmatprep.subr.mxu0 0.0
      %210 = vmatpush1.msra.mxu0 0.0
      %211 = vmatprep.subr.mxu0 0.0
      %212 = vmatpush1.msra.mxu0 0.0
      %213 = vmatprep.subr.mxu0 0.0
      %214 = vmatpush1.msra.mxu0 0.0
      %215 = vmatprep.subr.mxu0 0.0
      %216 = vmatpush1.msra.mxu0 0.0
      %217 = vmatprep.subr.mxu0 0.0
      %218 = vmatpush1.msra.mxu0 0.0
      %219 = vmatprep.subr.mxu0 0.0
      %220 = vmatpush1.msra.mxu0 0.0
      %221 = vmatprep.subr.mxu0 0.0
      %222 = vmatpush1.msra.mxu0 0.0
      %223 = vmatprep.subr.mxu0 0.0
      %224 = vmatpush1.msra.mxu0 0.0
      %225 = vmatprep.subr.mxu0 0.0
      %226 = vmatpush1.msra.mxu0 0.0
      %227 = vmatprep.subr.mxu0 0.0
      %228 = vmatpush1.msra.mxu0 0.0
      %229 = vmatprep.subr.mxu0 0.0
      %230 = vmatpush1.msra.mxu0 0.0
      %231 = vmatprep.subr.mxu0 0.0
      %232 = vmatpush1.msra.mxu0 0.0
      %233 = vmatprep.subr.mxu0 0.0
      %234 = vmatpush1.msra.mxu0 0.0
      %235 = vmatprep.subr.mxu0 0.0
      %236 = vmatpush1.msra.mxu0 0.0
      %237 = vmatprep.subr.mxu0 0.0
      %238 = vmatpush1.msra.mxu0 0.0
      %239 = vmatprep.subr.mxu0 0.0
      %240 = vmatpush1.msra.mxu0 0.0
      %241 = vmatprep.subr.mxu0 0.0
      %242 = vmatpush1.msra.mxu0 0.0
      %243 = vmatprep.subr.mxu0 0.0
      %244 = vmatpush1.msra.mxu0 0.0
      %245 = vmatprep.subr.mxu0 0.0
      %246 = vmatpush1.msra.mxu0 0.0
      %247 = vmatprep.subr.mxu0 0.0
      %248 = vmatpush1.msra.mxu0 0.0
      %249 = vmatprep.subr.mxu0 0.0
      %250 = vmatpush1.msra.mxu0 0.0
      %251 = vmatprep.subr.mxu0 0.0
      %252 = vmatpush1.msra.mxu0 0.0
      %253 = vmatprep.subr.mxu0 0.0
      %254 = vmatpush1.msra.mxu0 0.0
      %255 = vmatprep.mubr.f32.mxu0 0.0
      %256 = vmatmul.mubr.f32.gmra.mrb[0].mxu0 %v189
      %v257 = vpop.f32.mrb[0].mxu0
      %v258 = vadd.f32 %v186, %v257
      %v259 = vpop.f32.mrb[0].mxu0
      %260 = vdwg.mxu0
      %v261 = vld [vmem:[%s7] sm:$0x1]
      %v262 = vld [vmem:[%s8] sm:$0x1]
      %vm263 = vcmask 261120
      %v264 = vsel %vm263, %v258, 0.0
      %265 = vadd.xlane.f32.xlu0 %v264
      %v266 = vpop.xlane.xlu0 %265
      %v267 = vrcp.pop 32.0
      %v268 = vmul.f32 %v266, %v267
      %v269 = vsub.f32 %v258, %v268
      %v270 = vmul.f32 %v269, %v269
      %v271 = vsel %vm263, %v270, 0.0
      %272 = vadd.xlane.f32.xlu0 %v271
      %v273 = vpop.xlane.xlu0 %272
      %v274 = vmul.f32 %v273, %v267
      %v275 = vadd.f32 %v274, 1e-05
      %v276 = vrsqrt.pop %v275
      %v277 = vmul.f32 %v269, %v276
      %v279 = vlaneseq
      %v280 = vshrl.u32 %v279, 7
      %v281 = vsub.s32 0, %v280
      %v282 = vrot.slane %v261, %v281
      %v284 = vmul.f32 %v277, %v282
      %v286 = vlaneseq
      %v287 = vshrl.u32 %v286, 7
      %v288 = vsub.s32 0, %v287
      %v289 = vrot.slane %v262, %v288
      %v291 = vadd.f32 %v284, %v289
      %v292 = vmul.f32 %v291, 0.5
      %v293 = vmul.f32 %v291, 0.70710677
      %v294 = verf.f32.pop %v293
      %v295 = vadd.f32 %v294, 1.0
      %v296 = vmul.f32 %v292, %v295
      %297 = vst.msk [vmem:[#allocation2] sm:$0xff] %vm263, %v296
    $region49: #{tpu_custom_call.1} parent=1 // pred_fallthru
      _
    %v298 = vld [vmem:[#allocation2] sm:$0xff]
    %v299 = vld [vmem:[%s9] sm:$0xff]
    %v300 = vld [vmem:[%s9 + $0x8] sm:$0xff]
    %v301 = vld [vmem:[%s9 + $0x10] sm:$0xff]
    %v302 = vld [vmem:[%s9 + $0x18] sm:$0xff]
    %v303 = vld [vmem:[%s10] sm:$0x1]
    %v305 = vlaneseq
    %v306 = vshrl.u32 %v305, 7
    %v307 = vsub.s32 0, %v306
    %v308 = vrot.slane %v303, %v307
    %vm310 = vcmask 261120
    %v312 = vsel %vm310, %v298, 0
    %314 = vmatprep.subr.mxu0 0.0
    %315 = vmatpush1.msra.mxu0 %v299
    %316 = vmatprep.subr.mxu0 0.0
    %317 = vmatpush1.msra.mxu0 %v300
    %318 = vmatprep.subr.mxu0 0.0
    %319 = vmatpush1.msra.mxu0 %v301
    %320 = vmatprep.subr.mxu0 0.0
    %321 = vmatpush1.msra.mxu0 %v302
    %322 = vmatprep.subr.mxu0 0.0
    %323 = vmatpush1.msra.mxu0 0.0
    %324 = vmatprep.subr.mxu0 0.0
    %325 = vmatpush1.msra.mxu0 0.0
    %326 = vmatprep.subr.mxu0 0.0
    %327 = vmatpush1.msra.mxu0 0.0
    %328 = vmatprep.subr.mxu0 0.0
    %329 = vmatpush1.msra.mxu0 0.0
    %330 = vmatprep.subr.mxu0 0.0
    %331 = vmatpush1.msra.mxu0 0.0
    %332 = vmatprep.subr.mxu0 0.0
    %333 = vmatpush1.msra.mxu0 0.0
    %334 = vmatprep.subr.mxu0 0.0
    %335 = vmatpush1.msra.mxu0 0.0
    %336 = vmatprep.subr.mxu0 0.0
    %337 = vmatpush1.msra.mxu0 0.0
    %338 = vmatprep.subr.mxu0 0.0
    %339 = vmatpush1.msra.mxu0 0.0
    %340 = vmatprep.subr.mxu0 0.0
    %341 = vmatpush1.msra.mxu0 0.0
    %342 = vmatprep.subr.mxu0 0.0
    %343 = vmatpush1.msra.mxu0 0.0
    %344 = vmatprep.subr.mxu0 0.0
    %345 = vmatpush1.msra.mxu0 0.0
    %346 = vmatprep.subr.mxu0 0.0
    %347 = vmatpush1.msra.mxu0 0.0
    %348 = vmatprep.subr.mxu0 0.0
    %349 = vmatpush1.msra.mxu0 0.0
    %350 = vmatprep.subr.mxu0 0.0
    %351 = vmatpush1.msra.mxu0 0.0
    %352 = vmatprep.subr.mxu0 0.0
    %353 = vmatpush1.msra.mxu0 0.0
    %354 = vmatprep.subr.mxu0 0.0
    %355 = vmatpush1.msra.mxu0 0.0
    %356 = vmatprep.subr.mxu0 0.0
    %357 = vmatpush1.msra.mxu0 0.0
    %358 = vmatprep.subr.mxu0 0.0
    %359 = vmatpush1.msra.mxu0 0.0
    %360 = vmatprep.subr.mxu0 0.0
    %361 = vmatpush1.msra.mxu0 0.0
    %362 = vmatprep.subr.mxu0 0.0
    %363 = vmatpush1.msra.mxu0 0.0
    %364 = vmatprep.subr.mxu0 0.0
    %365 = vmatpush1.msra.mxu0 0.0
    %366 = vmatprep.subr.mxu0 0.0
    %367 = vmatpush1.msra.mxu0 0.0
    %368 = vmatprep.subr.mxu0 0.0
    %369 = vmatpush1.msra.mxu0 0.0
    %370 = vmatprep.subr.mxu0 0.0
    %371 = vmatpush1.msra.mxu0 0.0
    %372 = vmatprep.subr.mxu0 0.0
    %373 = vmatpush1.msra.mxu0 0.0
    %374 = vmatprep.subr.mxu0 0.0
    %375 = vmatpush1.msra.mxu0 0.0
    %376 = vmatprep.subr.mxu0 0.0
    %377 = vmatpush1.msra.mxu0 0.0
    %378 = vmatprep.mubr.f32.mxu0 0.0
    %379 = vmatmul.mubr.f32.gmra.mrb[0].mxu0 %v312
    %v380 = vpop.f32.mrb[0].mxu0
    %v381 = vadd.f32 %v308, %v380
    %v382 = vpop.f32.mrb[0].mxu0
    %383 = vdwg.mxu0
    %384 = vst [vmem:[#allocation3] sm:$0xff] %v381
    // Predicated region
    $region50: #{tpu_custom_call.1} parent=1 // pred_check
      _
    $region51: #{tpu_custom_call.1} parent=1 // pred_check_branch
      %386 = sbr.rel (0) target = $region53
    $region52: #{tpu_custom_call.1} parent=1 // pred_region
      %s388 = ssub.s32 128, 128
      %389 = vsyncadd [#allocation4], %s388
      %s391 = sshll.u32 [#allocation3], 4
      %s392 = int_to_ptr.vmem [resolvable:$true] %s391
      %394 = dma.vmem_to_hbm [thread:$0]  %s392, 128, %s11, [#allocation4]
    $region53: #{tpu_custom_call.1} parent=1 // pred_fallthru
      _
    // Predicated region
    $region54: #{tpu_custom_call.1} parent=1 // pred_check
      _
    $region55: #{tpu_custom_call.1} parent=1 // pred_check_branch
      %396 = sbr.rel (0) target = $region57
    $region56: #{tpu_custom_call.1} parent=1 // pred_region
      %397 = dma.done [#allocation4], 128
    $region57: #{tpu_custom_call.1} parent=1 // pred_fallthru
      _
    %398 = vsyncpa [#allocation4], 1

</llo_original>
